<compile_context>
chip_gen: v7x
topology: tpu7x:2x2x1
jax: 0.10.0
libtpu: 0.0.40
codegen_flags: <defaults>
</compile_context>

<pallas_src>
import functools

import jax
import jax.numpy as jnp
from jax import lax
from jax.experimental import pallas as pl
from jax.experimental.pallas import tpu as pltpu


# ---------------------------------------------------------------------------
# Generation-aware VMEM policy.
# ---------------------------------------------------------------------------
def _vmem_policy():
    """Returns (tile_budget_bytes, vmem_limit_bytes, min_col_grid_steps)."""
    try:
        cap = int(pltpu.get_tpu_info().vmem_capacity_bytes)
    except Exception:
        cap = 64 * 1024 * 1024  # unknown -> assume v7x-like (most conservative)
    if cap >= 100 * 1024 * 1024:
        # v5e / v6e: 128 MiB physical VMEM, 1 TensorCore per chip.
        return 40 * 1024 * 1024, 64 * 1024 * 1024, 1
    # v7x-like: 64 MiB VMEM per TensorCore, 2 TCs per chip.
    return 16 * 1024 * 1024, 32 * 1024 * 1024, 2


# ---------------------------------------------------------------------------
# Kernels.
# ---------------------------------------------------------------------------
def _softmax_dim0_block_kernel(x_ref, o_ref):
    """Softmax over axis 0 of a (R, c_tile) block (full row extent)."""
    x = x_ref[...].astype(jnp.float32)
    m = jnp.max(x, axis=0, keepdims=True)                 # (1, c_tile)
    e = jnp.exp(x - m)                                    # (R, c_tile) f32
    s = jnp.sum(e, axis=0, keepdims=True)                 # (1, c_tile)
    # approx=True -> EUP vrcp; error ~2^-12, far below the checked tolerance.
    o_ref[...] = (e * pl.reciprocal(s, approx=True)).astype(o_ref.dtype)


def _softmax_stats_kernel(x_ref, m_ref, s_ref, *, total_rows, r_tile):
    """Pass 1 of the tall-R fallback: online per-column (max, sum-of-exp)."""
    ri = pl.program_id(1)

    @pl.when(ri == 0)
    def _init():
        m_ref[...] = jnp.full_like(m_ref, -jnp.inf)
        s_ref[...] = jnp.zeros_like(s_ref)

    x = x_ref[...].astype(jnp.float32)
    # Mask rows that fall past R (partial last block) with -inf.
    row = lax.broadcasted_iota(jnp.int32, x.shape, 0) + ri * r_tile
    x = jnp.where(row < total_rows, x, -jnp.inf)

    m_prev = m_ref[...]
    m_new = jnp.maximum(m_prev, jnp.max(x, axis=0, keepdims=True))
    s_ref[...] = s_ref[...] * jnp.exp(m_prev - m_new) + jnp.sum(
        jnp.exp(x - m_new), axis=0, keepdims=True)
    m_ref[...] = m_new


def _softmax_normalize_kernel(x_ref, m_ref, s_ref, o_ref):
    """Pass 2 of the tall-R fallback: exp(x - m) / s, elementwise."""
    x = x_ref[...].astype(jnp.float32)
    e = jnp.exp(x - m_ref[...])
    o_ref[...] = (e * pl.reciprocal(s_ref[...], approx=True)).astype(o_ref.dtype)


# ---------------------------------------------------------------------------
# Tall-R fallback: two-pass (row-tiled) softmax over axis 0.
# ---------------------------------------------------------------------------
def _softmax_dim0_two_pass(
    x: jax.Array,
    *,
    r_tile: int | None = None,
    c_tile: int | None = None,
    budget: int = 16 * 1024 * 1024,
    vmem_limit: int = 32 * 1024 * 1024,
) -> jax.Array:
    R, C = x.shape
    itemsize = jnp.dtype(x.dtype).itemsize

    if c_tile is None:
        c_tile = min(512, pl.cdiv(C, 128) * 128) if C >= 128 else C
    if r_tile is None:
        # Per-element VMEM: in + out DMA (double-buffered, native dtype)
        # + ~2 f32 intermediates.
        per_elem = 4 * itemsize + 8
        r_tile = budget // (c_tile * per_elem)
        r_tile = max(8, min(2048, (r_tile // 8) * 8))
    r_tile = min(r_tile, pl.cdiv(R, 8) * 8)

    nr = pl.cdiv(R, r_tile)
    nc = pl.cdiv(C, c_tile)

    stats_kernel = functools.partial(
        _softmax_stats_kernel, total_rows=R, r_tile=r_tile)

    # Pass 1: per-column running (max, sum) — accumulator resident across the
    # (last, "arbitrary") row grid axis.
    m, s = pl.pallas_call(
        stats_kernel,
        out_shape=(jax.ShapeDtypeStruct((1, C), jnp.float32),
                   jax.ShapeDtypeStruct((1, C), jnp.float32)),
        grid_spec=pltpu.PrefetchScalarGridSpec(
            num_scalar_prefetch=0,
            grid=(nc, nr),
            in_specs=[pl.BlockSpec((r_tile, c_tile), lambda ci, ri: (ri, ci))],
            out_specs=(pl.BlockSpec((1, c_tile), lambda ci, ri: (0, ci)),
                       pl.BlockSpec((1, c_tile), lambda ci, ri: (0, ci))),
        ),
        compiler_params=pltpu.CompilerParams(
            dimension_semantics=("parallel", "arbitrary"),
            vmem_limit_bytes=vmem_limit,
        ),
    )(x)

    # Pass 2: normalize every (r_tile, c_tile) block independently.
    return pl.pallas_call(
        _softmax_normalize_kernel,
        out_shape=jax.ShapeDtypeStruct((R, C), x.dtype),
        grid_spec=pltpu.PrefetchScalarGridSpec(
            num_scalar_prefetch=0,
            grid=(nr, nc),
            in_specs=[pl.BlockSpec((r_tile, c_tile), lambda ri, ci: (ri, ci)),
                      pl.BlockSpec((1, c_tile), lambda ri, ci: (0, ci)),
                      pl.BlockSpec((1, c_tile), lambda ri, ci: (0, ci))],
            out_specs=pl.BlockSpec((r_tile, c_tile), lambda ri, ci: (ri, ci)),
        ),
        compiler_params=pltpu.CompilerParams(
            dimension_semantics=("parallel", "parallel"),
            vmem_limit_bytes=vmem_limit,
        ),
    )(x, m, s)


# ---------------------------------------------------------------------------
# Public entry point: softmax over axis 0 of a 2-D array.
# ---------------------------------------------------------------------------
def softmax_dim0(
    x: jax.Array,
    *,
    vmem_tile_budget_bytes: int | None = None,
    vmem_limit_bytes: int | None = None,
    fast_path_bytes: int = 2 * 1024 * 1024,
) -> jax.Array:
    assert x.ndim == 2, "expected a 2-D input (torch Softmax(dim=0) example)"
    R, C = x.shape
    out_shape = jax.ShapeDtypeStruct((R, C), x.dtype)
    itemsize = jnp.dtype(x.dtype).itemsize
    # f32 intermediates materialized per block: `e`, plus an upcast copy for
    # sub-f32 inputs.
    f32_copies = 1 if x.dtype == jnp.float32 else 2

    budget, limit, min_steps = _vmem_policy()
    if vmem_tile_budget_bytes is not None:
        budget = vmem_tile_budget_bytes
    if vmem_limit_bytes is not None:
        limit = vmem_limit_bytes

    # ---- Fast path: whole array is tiny -> single full-array block ---------
    whole_bytes = R * C * (2 * itemsize + f32_copies * 4)
    if whole_bytes <= fast_path_bytes:
        return pl.pallas_call(
            _softmax_dim0_block_kernel,
            out_shape=out_shape,
            in_specs=[pl.BlockSpec((R, C), lambda: (0, 0))],
            out_specs=pl.BlockSpec((R, C), lambda: (0, 0)),
        )(x)

    # ---- Column-tiled path: full R per block, lane-dense c_tile ------------
    def tile_bytes(c):
        # in + out DMA buffers (double-buffered, actual dtype) + f32 interm.
        return 2 * 2 * R * c * itemsize + f32_copies * R * c * 4

    c_min = 128 if C >= 128 else C
    if tile_bytes(c_min) <= budget:
        c_round = pl.cdiv(C, 128) * 128 if C >= 128 else C
        if min_steps >= 2 and C > 128:
            # >= 2 column grid steps so both v7x TensorCores get work.
            c_cap = max(128, ((c_round // 128 + 1) // 2) * 128)
        else:
            c_cap = c_round
        c_tile = c_min
        while c_tile < C and c_tile * 2 <= c_cap and tile_bytes(c_tile * 2) <= budget:
            c_tile *= 2

        grid = (pl.cdiv(C, c_tile),)
        return pl.pallas_call(
            _softmax_dim0_block_kernel,
            out_shape=out_shape,
            grid_spec=pltpu.PrefetchScalarGridSpec(
                num_scalar_prefetch=0,
                grid=grid,
                # Full R per block: the axis-0 reduction stays local.
                in_specs=[pl.BlockSpec((R, c_tile), lambda j: (0, j))],
                out_specs=pl.BlockSpec((R, c_tile), lambda j: (0, j)),
            ),
            compiler_params=pltpu.CompilerParams(
                dimension_semantics=("parallel",),
                vmem_limit_bytes=limit,
            ),
        )(x)

    # ---- Tall-R fallback: full-R blocks don't fit VMEM -> two-pass ---------
    return _softmax_dim0_two_pass(x, budget=budget, vmem_limit=limit)


if __name__ == "__main__":
    key = jax.random.PRNGKey(0)
    k1, k2, k3, k4 = jax.random.split(key, 4)

    # 1) The module's example shape: (2, 2) float32 (single-block fast path).
    x1 = jax.random.normal(k1, (2, 2), dtype=jnp.float32)
    z1 = softmax_dim0(x1)
    jax.block_until_ready(z1)
    assert jnp.allclose(z1, jax.nn.softmax(x1, axis=0), atol=2e-3, rtol=2e-3), \
        "mismatch vs reference (example shape)"

    # 2) Small lane-dense shape: still the single-block fast path.
    x2 = jax.random.normal(k2, (8, 512), dtype=jnp.float32)
    z2 = softmax_dim0(x2)
    jax.block_until_ready(z2)
    assert jnp.allclose(z2, jax.nn.softmax(x2, axis=0), atol=2e-3, rtol=2e-3), \
        "mismatch vs reference (fast path)"

    # 3) Wider shape: exercises the column-tiled grid path.
    x3 = jax.random.normal(k3, (16, 16384), dtype=jnp.float32)
    z3 = softmax_dim0(x3)
    jax.block_until_ready(z3)
    assert jnp.allclose(z3, jax.nn.softmax(x3, axis=0), atol=2e-3, rtol=2e-3), \
        "mismatch vs reference (tiled path)"

    # 4) Two-pass tall-R fallback, exercised directly at a small shape
    #    (R not a multiple of r_tile -> exercises the row mask too).
    x4 = jax.random.normal(k4, (40, 384), dtype=jnp.float32)
    z4 = _softmax_dim0_two_pass(x4, r_tile=16, c_tile=128)
    jax.block_until_ready(z4)
    assert jnp.allclose(z4, jax.nn.softmax(x4, axis=0), atol=2e-3, rtol=2e-3), \
        "mismatch vs reference (two-pass fallback)"

    print("KERNEL_OK")
</pallas_src>

<mosaic_0001>
module attributes {stable_mosaic.version = 11 : i64} {
  func.func @_softmax_dim0_block_kernel(%arg0: memref<2x2xf32, #tpu.memory_space<vmem>>, %arg1: memref<2x2xf32, #tpu.memory_space<vmem>>) attributes {dimension_semantics = [], scalar_prefetch = 0 : i64, scratch_operands = 0 : i64, tpu.core_type = #tpu.core_type<tc>} {
    %c0 = arith.constant 0 : index
    %c0_0 = arith.constant 0 : index
    %0 = vector.load %arg0[%c0, %c0_0] : memref<2x2xf32, #tpu.memory_space<vmem>>, vector<2x2xf32>
    %cst = arith.constant dense<0xFF800000> : vector<2xf32>
    %1 = vector.multi_reduction <maximumf>, %0, %cst [0] : vector<2x2xf32> to vector<2xf32>
    %2 = vector.shape_cast %1 : vector<2xf32> to vector<1x2xf32>
    %3 = vector.broadcast %2 : vector<1x2xf32> to vector<2x2xf32>
    %4 = arith.subf %0, %3 : vector<2x2xf32>
    %5 = math.exp %4 : vector<2x2xf32>
    %cst_1 = arith.constant dense<0.000000e+00> : vector<2xf32>
    %6 = vector.multi_reduction <add>, %5, %cst_1 [0] : vector<2x2xf32> to vector<2xf32>
    %7 = vector.shape_cast %6 : vector<2xf32> to vector<1x2xf32>
    %8 = tpu.reciprocal %7 {approx = true} : vector<1x2xf32> -> vector<1x2xf32>
    %9 = vector.broadcast %8 : vector<1x2xf32> to vector<2x2xf32>
    %10 = arith.mulf %5, %9 : vector<2x2xf32>
    %c0_2 = arith.constant 0 : index
    %c0_3 = arith.constant 0 : index
    %11 = vector.load %arg1[%c0_2, %c0_3] : memref<2x2xf32, #tpu.memory_space<vmem>>, vector<2x2xf32>
    tpu.vector_store %arg1[%c0_2, %c0_3], %10 {strides = array<i32>} : memref<2x2xf32, #tpu.memory_space<vmem>>, vector<2x2xf32>,
    return
  }
}

</mosaic_0001>

<llo_original>
// kernel: tpu_custom_call.1
$region0: #{tpu_custom_call.1}
  #allocation0 [shape = 'u32[]', space=smem, size = 0x4, offset = 0x4, fixed_abs, tag = 'smem constant byte address 0x4 - core index']
  #allocation1 [shape = 'u32[144,128]{1,0:T(1,128)}', space=vmem, size = 0x12000, scoped, tag = 'internal scratch']
  %s0 = inlined_call_operand.hbm [shape: f32[2,2], index: 0, kind: input, shape index: {}]
  %s1 = inlined_call_operand.hbm [shape: f32[2,2], index: 1, kind: output, shape index: {}]
  %s2 = sld [smem:[#allocation0]]
  $region18: #{tpu_custom_call.1} parent=0
    _
  %s4 = ssub.s32 1, %s2
  %s5 = scalar_select 0, %s4, %s2
  $region1: #{tpu_custom_call.1} parent=0
    #allocation2 [shape = 'u8[1024]{0}', space=vmem, size = 0x400, scoped, tag = 'input window, operand 0, single buffered']
    #allocation3 [shape = 's32[1]{0}', space=sflag, size = 0x4, scoped, tag = 'scoped memory for tpu_custom_call.1']
    #allocation4 [shape = 's32[1]{0}', space=sflag, size = 0x4, scoped, tag = 'scoped memory for tpu_custom_call.1']
    #allocation5 [shape = 'u8[1024]{0}', space=vmem, size = 0x400, scoped, tag = 'output window, operand 0, single buffered']
    %6 = vsyncpa [#allocation3], 0
    %7 = vsyncpa [#allocation4], 0
    // Predicated region
    $region2: #{tpu_custom_call.1} parent=1 // pred_check
      _
    $region3: #{tpu_custom_call.1} parent=1 // pred_check_branch
      %9 = sbr.rel (0) target = $region5
    $region4: #{tpu_custom_call.1} parent=1 // pred_region
      %s11 = ssub.s32 32, 32
      %12 = vsyncadd [#allocation3], %s11
      %s14 = sshll.u32 [#allocation2], 4
      %s15 = int_to_ptr.vmem [resolvable:$true] %s14
      %17 = dma.hbm_to_vmem [thread:$0]  %s0, 32, %s15, [#allocation3]
    $region5: #{tpu_custom_call.1} parent=1 // pred_fallthru
      _
    // Predicated region
    $region6: #{tpu_custom_call.1} parent=1 // pred_check
      _
    $region7: #{tpu_custom_call.1} parent=1 // pred_check_branch
      %19 = sbr.rel (0) target = $region9
    $region8: #{tpu_custom_call.1} parent=1 // pred_region
      %20 = dma.done [#allocation3], 32
    $region9: #{tpu_custom_call.1} parent=1 // pred_fallthru
      _
    %v21 = vld [vmem:[#allocation2] sm:$0x3]
    %vm22 = vcmask 9216
    %v23 = vsel %vm22, %v21, -inf
    %v24 = vrot.slane %v23, 4
    %v25 = vmax.f32 %v23, %v24
    %v26 = vrot.slane %v25, 2
    %v27 = vmax.f32 %v25, %v26
    %v28 = vrot.slane %v27, 1
    %v29 = vmax.f32 %v27, %v28
    %v30 = vsub.f32 %v21, %v29
    %v31 = vmul.f32 %v30, 1.442695
    %v32 = vpow.pop %v31
    %v33 = vsel %vm22, %v32, 0.0
    %v34 = vrot.slane %v33, 4
    %v35 = vadd.f32 %v33, %v34
    %v36 = vrot.slane %v35, 2
    %v37 = vadd.f32 %v35, %v36
    %v38 = vrot.slane %v37, 1
    %v39 = vadd.f32 %v37, %v38
    %v40 = vrcp.pop %v39
    %v41 = vmul.f32 %v32, %v40
    %42 = vst.msk [vmem:[#allocation5] sm:$0x3] %vm22, %v41
    // Predicated region
    $region10: #{tpu_custom_call.1} parent=1 // pred_check
      _
    $region11: #{tpu_custom_call.1} parent=1 // pred_check_branch
      %44 = sbr.rel (0) target = $region13
    $region12: #{tpu_custom_call.1} parent=1 // pred_region
      %s46 = ssub.s32 32, 32
      %47 = vsyncadd [#allocation4], %s46
      %s49 = sshll.u32 [#allocation5], 4
      %s50 = int_to_ptr.vmem [resolvable:$true] %s49
      %52 = dma.vmem_to_hbm [thread:$0]  %s50, 32, %s1, [#allocation4]
    $region13: #{tpu_custom_call.1} parent=1 // pred_fallthru
      _
    // Predicated region
    $region14: #{tpu_custom_call.1} parent=1 // pred_check
      _
    $region15: #{tpu_custom_call.1} parent=1 // pred_check_branch
      %54 = sbr.rel (0) target = $region17
    $region16: #{tpu_custom_call.1} parent=1 // pred_region
      %55 = dma.done [#allocation4], 32
    $region17: #{tpu_custom_call.1} parent=1 // pred_fallthru
      _
    %56 = vsyncpa [#allocation3], 1
    %57 = vsyncpa [#allocation4], 1

</llo_original>
